<compile_context>
chip_gen: v7x
topology: tpu7x:2x2x1
jax: 0.10.0
libtpu: 0.0.40
codegen_flags: <defaults>
</compile_context>

<pallas_src>
import functools

import jax
import jax.numpy as jnp
from jax import lax
from jax.experimental import pallas as pl
from jax.experimental.pallas import tpu as pltpu

NUM_LAYERS = 2
NUM_HEADS = 4
LN_EPS = 1e-5          # PyTorch default for nn.LayerNorm / TransformerEncoderLayer
L2_EPS = 1e-12         # F.normalize default eps
LANE = 128
SUBLANE = 8


def _round_up(n, m):
    return ((n + m - 1) // m) * m


# ----------------------------------------------------------------------------
# Kernel
# ----------------------------------------------------------------------------
def _layernorm(h, w, b, n_valid):
    """LayerNorm over the first `n_valid` lanes of `h`.

    Invariant: lanes >= n_valid of `h` are exactly zero, so sums over the full
    padded width equal sums over the valid lanes; w/b are zero-padded, so the
    output keeps zero padding lanes too (no mask needed).
    """
    inv_n = 1.0 / n_valid
    mu = jnp.sum(h, axis=-1, keepdims=True) * inv_n
    var = jnp.sum(h * h, axis=-1, keepdims=True) * inv_n - mu * mu
    var = jnp.maximum(var, 0.0)
    return (h - mu) * lax.rsqrt(var + LN_EPS) * w + b


def _siamese_kernel(x_ref, w_ref, v_ref, o_ref, *, hidden, out_dim, pad, in_rows):
    P = pad
    f32 = jnp.float32
    bf16 = jnp.bfloat16
    vec = v_ref[...]                                   # (rows, P) f32 biases + LN params

    def wblk(i, rows=P):                               # (rows, P) bf16 weight block
        return w_ref[i * P:i * P + rows, :]

    def vrow(i):                                       # (1, P) f32 bias / LN row
        return vec[i:i + 1, :]

    def mm(lhs, rhs):                                  # bf16 MXU, f32 accumulate
        return jnp.dot(lhs.astype(bf16), rhs, preferred_element_type=f32)

    x = x_ref[...]                                     # (tile_b, in_rows) f32
    h = x
    wi, vi = 0, 0
    for l in range(NUM_LAYERS):
        # Fused attention block (+ input_proj for layer 0):
        #   pre-LN1 = h @ (I + Wv Wo) + (bv Wo + bo)   [residual folded into weight]
        if l == 0:
            a = mm(x, wblk(0, in_rows)) + vrow(0)      # only first in_rows weight rows
        else:
            a = mm(h, wblk(wi)) + vrow(vi)
        a = _layernorm(a, vrow(vi + 1), vrow(vi + 2), hidden)             # LN1
        # Feed-forward (relu; dropout == identity in eval)
        ff = mm(a, wblk(wi + 1)) + vrow(vi + 3)
        ff = jnp.maximum(ff, 0.0)
        ff = mm(ff, wblk(wi + 2)) + vrow(vi + 4)
        h = _layernorm(a + ff, vrow(vi + 5), vrow(vi + 6), hidden)        # LN2
        wi += 3
        vi += 7

    # output_proj -> LayerNorm -> row-wise L2 normalize (F.normalize p=2 dim=1)
    z = mm(h, wblk(wi)) + vrow(vi)
    z = _layernorm(z, vrow(vi + 1), vrow(vi + 2), out_dim)
    ss = jnp.sum(z * z, axis=-1, keepdims=True)        # pad lanes are zero -> exact
    o_ref[...] = z * lax.rsqrt(jnp.maximum(ss, L2_EPS * L2_EPS))


# ----------------------------------------------------------------------------
# Host-side parameter folding / packing (done once, outside the kernel)
# ----------------------------------------------------------------------------
def fold_and_pack(params):
    """Fold the seq_len==1 attention and pack all parameters into two arrays.

    Returns:
      wpack: (7*P, P) bf16 — [Wfused0, Wf1_0, Wf2_0, Wattn1, Wf1_1, Wf2_1, Wout]
      vpack: (24,  P) f32  — per layer [b_attn, ln1w, ln1b, bf1, bf2, ln2w, ln2b],
                             then [bout, lnfw, lnfb], zero-padded to 24 rows.
    Padding lanes/rows are zero so they contribute nothing inside the kernel.
    """
    win = jnp.asarray(params["win"], jnp.float32)
    I, H = win.shape
    H4, H2 = 4 * H, H // 2
    P = _round_up(max(I, H, H4, H2), LANE)

    def pad_mat(w):
        w = jnp.asarray(w, jnp.float32)
        return jnp.pad(w, ((0, P - w.shape[0]), (0, P - w.shape[1])))

    def pad_vec(v):
        v = jnp.asarray(v, jnp.float32).reshape(1, -1)
        return jnp.pad(v, ((0, 0), (0, P - v.shape[1])))

    wblocks, vrows = [], []
    for l in range(NUM_LAYERS):
        # seq_len == 1  =>  MHA(h) == (h @ Wv + bv) @ Wo + bo  (Q/K and scale cancel).
        w_attn = jnp.eye(H, dtype=jnp.float32) + params["wv"][l] @ params["wo"][l]
        b_attn = params["bv"][l] @ params["wo"][l] + params["bo"][l]
        if l == 0:
            # Fold input_proj: (x Win + bin) @ Wa + ba = x (Win Wa) + (bin Wa + ba)
            b_attn = params["bin"] @ w_attn + b_attn
            w_attn = win @ w_attn
        wblocks += [pad_mat(w_attn), pad_mat(params["wf1"][l]), pad_mat(params["wf2"][l])]
        vrows += [pad_vec(b_attn),
                  pad_vec(params["ln1w"][l]), pad_vec(params["ln1b"][l]),
                  pad_vec(params["bf1"][l]), pad_vec(params["bf2"][l]),
                  pad_vec(params["ln2w"][l]), pad_vec(params["ln2b"][l])]
    wblocks.append(pad_mat(params["wout"]))
    vrows += [pad_vec(params["bout"]), pad_vec(params["lnfw"]), pad_vec(params["lnfb"])]

    wpack = jnp.concatenate(wblocks, axis=0).astype(jnp.bfloat16)   # bf16 MXU operands
    vpack = jnp.concatenate(vrows, axis=0)                          # f32 elementwise params
    vpack = jnp.pad(vpack, ((0, _round_up(vpack.shape[0], SUBLANE) - vpack.shape[0]), (0, 0)))
    return wpack, vpack


# ----------------------------------------------------------------------------
# Wrapper
# ----------------------------------------------------------------------------
@functools.partial(jax.jit, static_argnames=("hidden_size",))
def siamese_forward(x, wpack, vpack, *, hidden_size):
    B, I = x.shape
    H2 = hidden_size // 2
    P = wpack.shape[1]
    n_wblocks = wpack.shape[0] // P

    # Lane dim of x only needs bf16 sublane-pack granularity (16), not 128.
    Ipad = _round_up(I, 16)

    # Batch tiling: big tiles amortize per-step overhead and feed the MXU a deep
    # M dimension; keep >=2 grid steps for large batches so v7x's two
    # TensorCores both get work (grid axis is "parallel").
    MAX_TILE_B = 1024
    Bp0 = _round_up(B, SUBLANE)
    num_steps = max(pl.cdiv(Bp0, MAX_TILE_B), 2 if Bp0 >= 256 else 1)
    tile_b = _round_up(pl.cdiv(Bp0, num_steps), SUBLANE)
    Bp = tile_b * num_steps

    # Only copy/pad the input when the shapes are not already tile-aligned.
    if (Bp, Ipad) != (B, I):
        x_in = jnp.zeros((Bp, Ipad), jnp.float32).at[:B, :I].set(x.astype(jnp.float32))
    else:
        x_in = x.astype(jnp.float32)

    kern = functools.partial(_siamese_kernel, hidden=hidden_size, out_dim=H2,
                             pad=P, in_rows=Ipad)
    cost = pl.CostEstimate(
        flops=2 * Bp * P * (Ipad + (2 * NUM_LAYERS + 1) * P),
        transcendentals=6 * Bp,
        bytes_accessed=4 * x_in.size + 2 * wpack.size + 4 * vpack.size + 4 * Bp * P,
    )

    out = pl.pallas_call(
        kern,
        out_shape=jax.ShapeDtypeStruct((Bp, P), jnp.float32),
        grid=(num_steps,),
        in_specs=[
            pl.BlockSpec((tile_b, Ipad), lambda i: (i, 0)),           # activations: tiled
            pl.BlockSpec((n_wblocks * P, P), lambda i: (0, 0)),       # weights: resident
            pl.BlockSpec((vpack.shape[0], P), lambda i: (0, 0)),      # biases/LN: resident
        ],
        out_specs=pl.BlockSpec((tile_b, P), lambda i: (i, 0)),
        compiler_params=pltpu.CompilerParams(dimension_semantics=("parallel",)),
        cost_estimate=cost,
    )(x_in, wpack, vpack)
    return out[:B, :H2]


# ----------------------------------------------------------------------------
# Synthetic params + pure-JAX reference (full, un-folded math) for validation
# ----------------------------------------------------------------------------
def init_params(key, input_size, hidden_size):
    H, H4, H2, L = hidden_size, 4 * hidden_size, hidden_size // 2, NUM_LAYERS
    ks = jax.random.split(key, 22)
    s = 0.08
    n = lambda k, shp: jax.random.normal(k, shp, jnp.float32) * s
    return {
        "win": n(ks[0], (input_size, H)), "bin": n(ks[1], (1, H)),
        "wq": n(ks[2], (L, H, H)), "bq": n(ks[3], (L, 1, H)),
        "wk": n(ks[4], (L, H, H)), "bk": n(ks[5], (L, 1, H)),
        "wv": n(ks[6], (L, H, H)), "bv": n(ks[7], (L, 1, H)),
        "wo": n(ks[8], (L, H, H)), "bo": n(ks[9], (L, 1, H)),
        "ln1w": 1.0 + n(ks[10], (L, 1, H)), "ln1b": n(ks[11], (L, 1, H)),
        "wf1": n(ks[12], (L, H, H4)), "bf1": n(ks[13], (L, 1, H4)),
        "wf2": n(ks[14], (L, H4, H)), "bf2": n(ks[15], (L, 1, H)),
        "ln2w": 1.0 + n(ks[16], (L, 1, H)), "ln2b": n(ks[17], (L, 1, H)),
        "wout": n(ks[18], (H, H2)), "bout": n(ks[19], (1, H2)),
        "lnfw": 1.0 + n(ks[20], (1, H2)), "lnfb": n(ks[21], (1, H2)),
    }


def reference_forward(x, p):
    """Un-folded eval-mode forward (explicit per-head attention over the length-1 seq)."""
    def ln(h, w, b):
        mu = jnp.mean(h, -1, keepdims=True)
        var = jnp.mean((h - mu) ** 2, -1, keepdims=True)
        return (h - mu) * lax.rsqrt(var + LN_EPS) * w + b

    B = x.shape[0]
    H = p["win"].shape[1]
    hd = H // NUM_HEADS
    h = x @ p["win"] + p["bin"]                       # (B, H); sequence length is 1
    for l in range(NUM_LAYERS):
        q = (h @ p["wq"][l] + p["bq"][l]).reshape(B, NUM_HEADS, hd)
        k = (h @ p["wk"][l] + p["bk"][l]).reshape(B, NUM_HEADS, hd)
        v = (h @ p["wv"][l] + p["bv"][l]).reshape(B, NUM_HEADS, hd)
        scores = jnp.sum(q * k, -1, keepdims=True) / jnp.sqrt(hd)         # (B, nh, 1)
        attn_w = jax.nn.softmax(scores[..., None], axis=-1)[..., 0]       # == 1.0
        attn = ((attn_w * v).reshape(B, H)) @ p["wo"][l] + p["bo"][l]
        h = ln(h + attn, p["ln1w"][l], p["ln1b"][l])
        ff = jnp.maximum(h @ p["wf1"][l] + p["bf1"][l], 0.0) @ p["wf2"][l] + p["bf2"][l]
        h = ln(h + ff, p["ln2w"][l], p["ln2b"][l])
    z = h @ p["wout"] + p["bout"]
    z = ln(z, p["lnfw"], p["lnfb"])
    nrm = jnp.sqrt(jnp.sum(z * z, -1, keepdims=True))
    return z / jnp.maximum(nrm, L2_EPS)


if __name__ == "__main__":
    key = jax.random.PRNGKey(0)
    k_x, k_p = jax.random.split(key)

    batch, input_size, hidden_size = 8, 64, 32        # output dim = hidden//2 = 16
    x = jax.random.normal(k_x, (batch, input_size), jnp.float32)
    params = init_params(k_p, input_size, hidden_size)

    # One-time host-side fold + pack and the f32 reference, both at "highest"
    # matmul precision (scoped so it does NOT leak into the Pallas kernel).
    with jax.default_matmul_precision("highest"):
        wpack, vpack = fold_and_pack(params)
        ref = reference_forward(x, params)
    wpack, vpack, ref = jax.block_until_ready((wpack, vpack, ref))

    out = siamese_forward(x, wpack, vpack, hidden_size=hidden_size)
    out = jax.block_until_ready(out)

    assert out.shape == (batch, hidden_size // 2), out.shape
    assert bool(jnp.all(jnp.isfinite(out)))
    norms = jnp.linalg.norm(out, axis=1)
    assert bool(jnp.all(jnp.abs(norms - 1.0) < 1e-4)), norms

    # Kernel uses bf16 MXU operands (f32 accumulate), so the tolerance against
    # the f32-"highest" un-folded reference is looser than a pure-f32 kernel.
    max_err = float(jnp.max(jnp.abs(out - ref)))
    mean_err = float(jnp.mean(jnp.abs(out - ref)))
    assert max_err < 8e-2, max_err
    assert mean_err < 2.5e-2, mean_err

    print("KERNEL_OK")
</pallas_src>

<mosaic_0001>
module attributes {stable_mosaic.version = 11 : i64} {
  func.func @_siamese_kernel(%arg0: i32, %arg1: memref<8x64xf32, #tpu.memory_space<vmem>>, %arg2: memref<896x128xbf16, #tpu.memory_space<vmem>>, %arg3: memref<24x128xf32, #tpu.memory_space<vmem>>, %arg4: memref<8x128xf32, #tpu.memory_space<vmem>>) attributes {dimension_semantics = [#tpu.dimension_semantics<parallel>], iteration_bounds = array<i64: 1>, scalar_prefetch = 0 : i64, scratch_operands = 0 : i64, tpu.core_type = #tpu.core_type<tc>, window_params = [{transform_indices = @transform_0, window_bounds = array<i64: 8, 64>}, {pipeline_mode = #tpu.pipeline_mode<synchronous>, transform_indices = @transform_1, window_bounds = array<i64: 896, 128>}, {pipeline_mode = #tpu.pipeline_mode<synchronous>, transform_indices = @transform_2, window_bounds = array<i64: 24, 128>}, {transform_indices = @transform_3, window_bounds = array<i64: 8, 128>}]} {
    %c0 = arith.constant 0 : index
    %c0_0 = arith.constant 0 : index
    %0 = vector.load %arg3[%c0, %c0_0] : memref<24x128xf32, #tpu.memory_space<vmem>>, vector<24x128xf32>
    %c0_1 = arith.constant 0 : index
    %c0_2 = arith.constant 0 : index
    %1 = vector.load %arg1[%c0_1, %c0_2] : memref<8x64xf32, #tpu.memory_space<vmem>>, vector<8x64xf32>
    %c0_3 = arith.constant 0 : index
    %c0_4 = arith.constant 0 : index
    %2 = vector.load %arg2[%c0_3, %c0_4] : memref<896x128xbf16, #tpu.memory_space<vmem>>, vector<64x128xbf16>
    %3 = arith.truncf %1 : vector<8x64xf32> to vector<8x64xbf16>
    %cst = arith.constant dense<0.000000e+00> : vector<8x128xf32>
    %4 = tpu.matmul %3, %2, %cst {dimension_numbers = #tpu.dot_dimension_numbers<[1], [0], [0], [1], [0, 0, 1, 1], [], []>} : vector<8x64xbf16>, vector<64x128xbf16>, vector<8x128xf32> -> vector<8x128xf32>
    %5 = vector.extract_strided_slice %0 {offsets = [0, 0], sizes = [1, 128], strides = [1, 1]} : vector<24x128xf32> to vector<1x128xf32>
    %6 = vector.broadcast %5 : vector<1x128xf32> to vector<8x128xf32>
    %7 = arith.addf %4, %6 : vector<8x128xf32>
    %8 = vector.extract_strided_slice %0 {offsets = [1, 0], sizes = [1, 128], strides = [1, 1]} : vector<24x128xf32> to vector<1x128xf32>
    %9 = vector.extract_strided_slice %0 {offsets = [2, 0], sizes = [1, 128], strides = [1, 1]} : vector<24x128xf32> to vector<1x128xf32>
    %cst_5 = arith.constant dense<0.000000e+00> : vector<8xf32>
    %10 = vector.multi_reduction <add>, %7, %cst_5 [1] : vector<8x128xf32> to vector<8xf32>
    %11 = vector.shape_cast %10 : vector<8xf32> to vector<8x1xf32>
    %cst_6 = arith.constant 3.125000e-02 : f32
    %12 = vector.broadcast %cst_6 : f32 to vector<8x1xf32>
    %13 = arith.mulf %11, %12 : vector<8x1xf32>
    %14 = arith.mulf %7, %7 : vector<8x128xf32>
    %cst_7 = arith.constant dense<0.000000e+00> : vector<8xf32>
    %15 = vector.multi_reduction <add>, %14, %cst_7 [1] : vector<8x128xf32> to vector<8xf32>
    %16 = vector.shape_cast %15 : vector<8xf32> to vector<8x1xf32>
    %cst_8 = arith.constant 3.125000e-02 : f32
    %17 = vector.broadcast %cst_8 : f32 to vector<8x1xf32>
    %18 = arith.mulf %16, %17 : vector<8x1xf32>
    %19 = arith.mulf %13, %13 : vector<8x1xf32>
    %20 = arith.subf %18, %19 : vector<8x1xf32>
    %cst_9 = arith.constant 0.000000e+00 : f32
    %21 = vector.broadcast %cst_9 : f32 to vector<8x1xf32>
    %22 = arith.maximumf %20, %21 : vector<8x1xf32>
    %23 = vector.broadcast %13 : vector<8x1xf32> to vector<8x128xf32>
    %24 = arith.subf %7, %23 : vector<8x128xf32>
    %cst_10 = arith.constant 9.99999974E-6 : f32
    %25 = vector.broadcast %cst_10 : f32 to vector<8x1xf32>
    %26 = arith.addf %22, %25 : vector<8x1xf32>
    %27 = math.rsqrt %26 : vector<8x1xf32>
    %28 = vector.broadcast %27 : vector<8x1xf32> to vector<8x128xf32>
    %29 = arith.mulf %24, %28 : vector<8x128xf32>
    %30 = vector.broadcast %8 : vector<1x128xf32> to vector<8x128xf32>
    %31 = arith.mulf %29, %30 : vector<8x128xf32>
    %32 = vector.broadcast %9 : vector<1x128xf32> to vector<8x128xf32>
    %33 = arith.addf %31, %32 : vector<8x128xf32>
    %c128 = arith.constant 128 : index
    %c0_11 = arith.constant 0 : index
    %34 = vector.load %arg2[%c128, %c0_11] : memref<896x128xbf16, #tpu.memory_space<vmem>>, vector<128x128xbf16>
    %35 = arith.truncf %33 : vector<8x128xf32> to vector<8x128xbf16>
    %cst_12 = arith.constant dense<0.000000e+00> : vector<8x128xf32>
    %36 = tpu.matmul %35, %34, %cst_12 {dimension_numbers = #tpu.dot_dimension_numbers<[1], [0], [0], [1], [0, 0, 1, 1], [], []>} : vector<8x128xbf16>, vector<128x128xbf16>, vector<8x128xf32> -> vector<8x128xf32>
    %37 = vector.extract_strided_slice %0 {offsets = [3, 0], sizes = [1, 128], strides = [1, 1]} : vector<24x128xf32> to vector<1x128xf32>
    %38 = vector.broadcast %37 : vector<1x128xf32> to vector<8x128xf32>
    %39 = arith.addf %36, %38 : vector<8x128xf32>
    %cst_13 = arith.constant 0.000000e+00 : f32
    %40 = vector.broadcast %cst_13 : f32 to vector<8x128xf32>
    %41 = arith.maximumf %39, %40 : vector<8x128xf32>
    %c256 = arith.constant 256 : index
    %c0_14 = arith.constant 0 : index
    %42 = vector.load %arg2[%c256, %c0_14] : memref<896x128xbf16, #tpu.memory_space<vmem>>, vector<128x128xbf16>
    %43 = arith.truncf %41 : vector<8x128xf32> to vector<8x128xbf16>
    %cst_15 = arith.constant dense<0.000000e+00> : vector<8x128xf32>
    %44 = tpu.matmul %43, %42, %cst_15 {dimension_numbers = #tpu.dot_dimension_numbers<[1], [0], [0], [1], [0, 0, 1, 1], [], []>} : vector<8x128xbf16>, vector<128x128xbf16>, vector<8x128xf32> -> vector<8x128xf32>
    %45 = vector.extract_strided_slice %0 {offsets = [4, 0], sizes = [1, 128], strides = [1, 1]} : vector<24x128xf32> to vector<1x128xf32>
    %46 = vector.broadcast %45 : vector<1x128xf32> to vector<8x128xf32>
    %47 = arith.addf %44, %46 : vector<8x128xf32>
    %48 = arith.addf %33, %47 : vector<8x128xf32>
    %49 = vector.extract_strided_slice %0 {offsets = [5, 0], sizes = [1, 128], strides = [1, 1]} : vector<24x128xf32> to vector<1x128xf32>
    %50 = vector.extract_strided_slice %0 {offsets = [6, 0], sizes = [1, 128], strides = [1, 1]} : vector<24x128xf32> to vector<1x128xf32>
    %cst_16 = arith.constant dense<0.000000e+00> : vector<8xf32>
    %51 = vector.multi_reduction <add>, %48, %cst_16 [1] : vector<8x128xf32> to vector<8xf32>
    %52 = vector.shape_cast %51 : vector<8xf32> to vector<8x1xf32>
    %cst_17 = arith.constant 3.125000e-02 : f32
    %53 = vector.broadcast %cst_17 : f32 to vector<8x1xf32>
    %54 = arith.mulf %52, %53 : vector<8x1xf32>
    %55 = arith.mulf %48, %48 : vector<8x128xf32>
    %cst_18 = arith.constant dense<0.000000e+00> : vector<8xf32>
    %56 = vector.multi_reduction <add>, %55, %cst_18 [1] : vector<8x128xf32> to vector<8xf32>
    %57 = vector.shape_cast %56 : vector<8xf32> to vector<8x1xf32>
    %cst_19 = arith.constant 3.125000e-02 : f32
    %58 = vector.broadcast %cst_19 : f32 to vector<8x1xf32>
    %59 = arith.mulf %57, %58 : vector<8x1xf32>
    %60 = arith.mulf %54, %54 : vector<8x1xf32>
    %61 = arith.subf %59, %60 : vector<8x1xf32>
    %cst_20 = arith.constant 0.000000e+00 : f32
    %62 = vector.broadcast %cst_20 : f32 to vector<8x1xf32>
    %63 = arith.maximumf %61, %62 : vector<8x1xf32>
    %64 = vector.broadcast %54 : vector<8x1xf32> to vector<8x128xf32>
    %65 = arith.subf %48, %64 : vector<8x128xf32>
    %cst_21 = arith.constant 9.99999974E-6 : f32
    %66 = vector.broadcast %cst_21 : f32 to vector<8x1xf32>
    %67 = arith.addf %63, %66 : vector<8x1xf32>
    %68 = math.rsqrt %67 : vector<8x1xf32>
    %69 = vector.broadcast %68 : vector<8x1xf32> to vector<8x128xf32>
    %70 = arith.mulf %65, %69 : vector<8x128xf32>
    %71 = vector.broadcast %49 : vector<1x128xf32> to vector<8x128xf32>
    %72 = arith.mulf %70, %71 : vector<8x128xf32>
    %73 = vector.broadcast %50 : vector<1x128xf32> to vector<8x128xf32>
    %74 = arith.addf %72, %73 : vector<8x128xf32>
    %c384 = arith.constant 384 : index
    %c0_22 = arith.constant 0 : index
    %75 = vector.load %arg2[%c384, %c0_22] : memref<896x128xbf16, #tpu.memory_space<vmem>>, vector<128x128xbf16>
    %76 = arith.truncf %74 : vector<8x128xf32> to vector<8x128xbf16>
    %cst_23 = arith.constant dense<0.000000e+00> : vector<8x128xf32>
    %77 = tpu.matmul %76, %75, %cst_23 {dimension_numbers = #tpu.dot_dimension_numbers<[1], [0], [0], [1], [0, 0, 1, 1], [], []>} : vector<8x128xbf16>, vector<128x128xbf16>, vector<8x128xf32> -> vector<8x128xf32>
    %78 = vector.extract_strided_slice %0 {offsets = [7, 0], sizes = [1, 128], strides = [1, 1]} : vector<24x128xf32> to vector<1x128xf32>
    %79 = vector.broadcast %78 : vector<1x128xf32> to vector<8x128xf32>
    %80 = arith.addf %77, %79 : vector<8x128xf32>
    %81 = vector.extract_strided_slice %0 {offsets = [8, 0], sizes = [1, 128], strides = [1, 1]} : vector<24x128xf32> to vector<1x128xf32>
    %82 = vector.extract_strided_slice %0 {offsets = [9, 0], sizes = [1, 128], strides = [1, 1]} : vector<24x128xf32> to vector<1x128xf32>
    %cst_24 = arith.constant dense<0.000000e+00> : vector<8xf32>
    %83 = vector.multi_reduction <add>, %80, %cst_24 [1] : vector<8x128xf32> to vector<8xf32>
    %84 = vector.shape_cast %83 : vector<8xf32> to vector<8x1xf32>
    %cst_25 = arith.constant 3.125000e-02 : f32
    %85 = vector.broadcast %cst_25 : f32 to vector<8x1xf32>
    %86 = arith.mulf %84, %85 : vector<8x1xf32>
    %87 = arith.mulf %80, %80 : vector<8x128xf32>
    %cst_26 = arith.constant dense<0.000000e+00> : vector<8xf32>
    %88 = vector.multi_reduction <add>, %87, %cst_26 [1] : vector<8x128xf32> to vector<8xf32>
    %89 = vector.shape_cast %88 : vector<8xf32> to vector<8x1xf32>
    %cst_27 = arith.constant 3.125000e-02 : f32
    %90 = vector.broadcast %cst_27 : f32 to vector<8x1xf32>
    %91 = arith.mulf %89, %90 : vector<8x1xf32>
    %92 = arith.mulf %86, %86 : vector<8x1xf32>
    %93 = arith.subf %91, %92 : vector<8x1xf32>
    %cst_28 = arith.constant 0.000000e+00 : f32
    %94 = vector.broadcast %cst_28 : f32 to vector<8x1xf32>
    %95 = arith.maximumf %93, %94 : vector<8x1xf32>
    %96 = vector.broadcast %86 : vector<8x1xf32> to vector<8x128xf32>
    %97 = arith.subf %80, %96 : vector<8x128xf32>
    %cst_29 = arith.constant 9.99999974E-6 : f32
    %98 = vector.broadcast %cst_29 : f32 to vector<8x1xf32>
    %99 = arith.addf %95, %98 : vector<8x1xf32>
    %100 = math.rsqrt %99 : vector<8x1xf32>
    %101 = vector.broadcast %100 : vector<8x1xf32> to vector<8x128xf32>
    %102 = arith.mulf %97, %101 : vector<8x128xf32>
    %103 = vector.broadcast %81 : vector<1x128xf32> to vector<8x128xf32>
    %104 = arith.mulf %102, %103 : vector<8x128xf32>
    %105 = vector.broadcast %82 : vector<1x128xf32> to vector<8x128xf32>
    %106 = arith.addf %104, %105 : vector<8x128xf32>
    %c512 = arith.constant 512 : index
    %c0_30 = arith.constant 0 : index
    %107 = vector.load %arg2[%c512, %c0_30] : memref<896x128xbf16, #tpu.memory_space<vmem>>, vector<128x128xbf16>
    %108 = arith.truncf %106 : vector<8x128xf32> to vector<8x128xbf16>
    %cst_31 = arith.constant dense<0.000000e+00> : vector<8x128xf32>
    %109 = tpu.matmul %108, %107, %cst_31 {dimension_numbers = #tpu.dot_dimension_numbers<[1], [0], [0], [1], [0, 0, 1, 1], [], []>} : vector<8x128xbf16>, vector<128x128xbf16>, vector<8x128xf32> -> vector<8x128xf32>
    %110 = vector.extract_strided_slice %0 {offsets = [10, 0], sizes = [1, 128], strides = [1, 1]} : vector<24x128xf32> to vector<1x128xf32>
    %111 = vector.broadcast %110 : vector<1x128xf32> to vector<8x128xf32>
    %112 = arith.addf %109, %111 : vector<8x128xf32>
    %cst_32 = arith.constant 0.000000e+00 : f32
    %113 = vector.broadcast %cst_32 : f32 to vector<8x128xf32>
    %114 = arith.maximumf %112, %113 : vector<8x128xf32>
    %c640 = arith.constant 640 : index
    %c0_33 = arith.constant 0 : index
    %115 = vector.load %arg2[%c640, %c0_33] : memref<896x128xbf16, #tpu.memory_space<vmem>>, vector<128x128xbf16>
    %116 = arith.truncf %114 : vector<8x128xf32> to vector<8x128xbf16>
    %cst_34 = arith.constant dense<0.000000e+00> : vector<8x128xf32>
    %117 = tpu.matmul %116, %115, %cst_34 {dimension_numbers = #tpu.dot_dimension_numbers<[1], [0], [0], [1], [0, 0, 1, 1], [], []>} : vector<8x128xbf16>, vector<128x128xbf16>, vector<8x128xf32> -> vector<8x128xf32>
    %118 = vector.extract_strided_slice %0 {offsets = [11, 0], sizes = [1, 128], strides = [1, 1]} : vector<24x128xf32> to vector<1x128xf32>
    %119 = vector.broadcast %118 : vector<1x128xf32> to vector<8x128xf32>
    %120 = arith.addf %117, %119 : vector<8x128xf32>
    %121 = arith.addf %106, %120 : vector<8x128xf32>
    %122 = vector.extract_strided_slice %0 {offsets = [12, 0], sizes = [1, 128], strides = [1, 1]} : vector<24x128xf32> to vector<1x128xf32>
    %123 = vector.extract_strided_slice %0 {offsets = [13, 0], sizes = [1, 128], strides = [1, 1]} : vector<24x128xf32> to vector<1x128xf32>
    %cst_35 = arith.constant dense<0.000000e+00> : vector<8xf32>
    %124 = vector.multi_reduction <add>, %121, %cst_35 [1] : vector<8x128xf32> to vector<8xf32>
    %125 = vector.shape_cast %124 : vector<8xf32> to vector<8x1xf32>
    %cst_36 = arith.constant 3.125000e-02 : f32
    %126 = vector.broadcast %cst_36 : f32 to vector<8x1xf32>
    %127 = arith.mulf %125, %126 : vector<8x1xf32>
    %128 = arith.mulf %121, %121 : vector<8x128xf32>
    %cst_37 = arith.constant dense<0.000000e+00> : vector<8xf32>
    %129 = vector.multi_reduction <add>, %128, %cst_37 [1] : vector<8x128xf32> to vector<8xf32>
    %130 = vector.shape_cast %129 : vector<8xf32> to vector<8x1xf32>
    %cst_38 = arith.constant 3.125000e-02 : f32
    %131 = vector.broadcast %cst_38 : f32 to vector<8x1xf32>
    %132 = arith.mulf %130, %131 : vector<8x1xf32>
    %133 = arith.mulf %127, %127 : vector<8x1xf32>
    %134 = arith.subf %132, %133 : vector<8x1xf32>
    %cst_39 = arith.constant 0.000000e+00 : f32
    %135 = vector.broadcast %cst_39 : f32 to vector<8x1xf32>
    %136 = arith.maximumf %134, %135 : vector<8x1xf32>
    %137 = vector.broadcast %127 : vector<8x1xf32> to vector<8x128xf32>
    %138 = arith.subf %121, %137 : vector<8x128xf32>
    %cst_40 = arith.constant 9.99999974E-6 : f32
    %139 = vector.broadcast %cst_40 : f32 to vector<8x1xf32>
    %140 = arith.addf %136, %139 : vector<8x1xf32>
    %141 = math.rsqrt %140 : vector<8x1xf32>
    %142 = vector.broadcast %141 : vector<8x1xf32> to vector<8x128xf32>
    %143 = arith.mulf %138, %142 : vector<8x128xf32>
    %144 = vector.broadcast %122 : vector<1x128xf32> to vector<8x128xf32>
    %145 = arith.mulf %143, %144 : vector<8x128xf32>
    %146 = vector.broadcast %123 : vector<1x128xf32> to vector<8x128xf32>
    %147 = arith.addf %145, %146 : vector<8x128xf32>
    %c768 = arith.constant 768 : index
    %c0_41 = arith.constant 0 : index
    %148 = vector.load %arg2[%c768, %c0_41] : memref<896x128xbf16, #tpu.memory_space<vmem>>, vector<128x128xbf16>
    %149 = arith.truncf %147 : vector<8x128xf32> to vector<8x128xbf16>
    %cst_42 = arith.constant dense<0.000000e+00> : vector<8x128xf32>
    %150 = tpu.matmul %149, %148, %cst_42 {dimension_numbers = #tpu.dot_dimension_numbers<[1], [0], [0], [1], [0, 0, 1, 1], [], []>} : vector<8x128xbf16>, vector<128x128xbf16>, vector<8x128xf32> -> vector<8x128xf32>
    %151 = vector.extract_strided_slice %0 {offsets = [14, 0], sizes = [1, 128], strides = [1, 1]} : vector<24x128xf32> to vector<1x128xf32>
    %152 = vector.broadcast %151 : vector<1x128xf32> to vector<8x128xf32>
    %153 = arith.addf %150, %152 : vector<8x128xf32>
    %154 = vector.extract_strided_slice %0 {offsets = [15, 0], sizes = [1, 128], strides = [1, 1]} : vector<24x128xf32> to vector<1x128xf32>
    %155 = vector.extract_strided_slice %0 {offsets = [16, 0], sizes = [1, 128], strides = [1, 1]} : vector<24x128xf32> to vector<1x128xf32>
    %cst_43 = arith.constant dense<0.000000e+00> : vector<8xf32>
    %156 = vector.multi_reduction <add>, %153, %cst_43 [1] : vector<8x128xf32> to vector<8xf32>
    %157 = vector.shape_cast %156 : vector<8xf32> to vector<8x1xf32>
    %cst_44 = arith.constant 6.250000e-02 : f32
    %158 = vector.broadcast %cst_44 : f32 to vector<8x1xf32>
    %159 = arith.mulf %157, %158 : vector<8x1xf32>
    %160 = arith.mulf %153, %153 : vector<8x128xf32>
    %cst_45 = arith.constant dense<0.000000e+00> : vector<8xf32>
    %161 = vector.multi_reduction <add>, %160, %cst_45 [1] : vector<8x128xf32> to vector<8xf32>
    %162 = vector.shape_cast %161 : vector<8xf32> to vector<8x1xf32>
    %cst_46 = arith.constant 6.250000e-02 : f32
    %163 = vector.broadcast %cst_46 : f32 to vector<8x1xf32>
    %164 = arith.mulf %162, %163 : vector<8x1xf32>
    %165 = arith.mulf %159, %159 : vector<8x1xf32>
    %166 = arith.subf %164, %165 : vector<8x1xf32>
    %cst_47 = arith.constant 0.000000e+00 : f32
    %167 = vector.broadcast %cst_47 : f32 to vector<8x1xf32>
    %168 = arith.maximumf %166, %167 : vector<8x1xf32>
    %169 = vector.broadcast %159 : vector<8x1xf32> to vector<8x128xf32>
    %170 = arith.subf %153, %169 : vector<8x128xf32>
    %cst_48 = arith.constant 9.99999974E-6 : f32
    %171 = vector.broadcast %cst_48 : f32 to vector<8x1xf32>
    %172 = arith.addf %168, %171 : vector<8x1xf32>
    %173 = math.rsqrt %172 : vector<8x1xf32>
    %174 = vector.broadcast %173 : vector<8x1xf32> to vector<8x128xf32>
    %175 = arith.mulf %170, %174 : vector<8x128xf32>
    %176 = vector.broadcast %154 : vector<1x128xf32> to vector<8x128xf32>
    %177 = arith.mulf %175, %176 : vector<8x128xf32>
    %178 = vector.broadcast %155 : vector<1x128xf32> to vector<8x128xf32>
    %179 = arith.addf %177, %178 : vector<8x128xf32>
    %180 = arith.mulf %179, %179 : vector<8x128xf32>
    %cst_49 = arith.constant dense<0.000000e+00> : vector<8xf32>
    %181 = vector.multi_reduction <add>, %180, %cst_49 [1] : vector<8x128xf32> to vector<8xf32>
    %182 = vector.shape_cast %181 : vector<8xf32> to vector<8x1xf32>
    %cst_50 = arith.constant 1.000000e-24 : f32
    %183 = vector.broadcast %cst_50 : f32 to vector<8x1xf32>
    %184 = arith.maximumf %182, %183 : vector<8x1xf32>
    %185 = math.rsqrt %184 : vector<8x1xf32>
    %186 = vector.broadcast %185 : vector<8x1xf32> to vector<8x128xf32>
    %187 = arith.mulf %179, %186 : vector<8x128xf32>
    %c0_51 = arith.constant 0 : index
    %c0_52 = arith.constant 0 : index
    %188 = vector.load %arg4[%c0_51, %c0_52] : memref<8x128xf32, #tpu.memory_space<vmem>>, vector<8x128xf32>
    tpu.vector_store %arg4[%c0_51, %c0_52], %187 {strides = array<i32>} : memref<8x128xf32, #tpu.memory_space<vmem>>, vector<8x128xf32>,
    return
  }
  func.func @transform_0(%arg0: i32) -> (i32, i32) {
    %c0_i32 = arith.constant 0 : i32
    %c0_i32_0 = arith.constant 0 : i32
    return %arg0, %c0_i32 : i32, i32
  }
  func.func @transform_1(%arg0: i32) -> (i32, i32) {
    %c0_i32 = arith.constant 0 : i32
    %c0_i32_0 = arith.constant 0 : i32
    %c0_i32_1 = arith.constant 0 : i32
    return %c0_i32, %c0_i32_0 : i32, i32
  }
  func.func @transform_2(%arg0: i32) -> (i32, i32) {
    %c0_i32 = arith.constant 0 : i32
    %c0_i32_0 = arith.constant 0 : i32
    %c0_i32_1 = arith.constant 0 : i32
    return %c0_i32, %c0_i32_0 : i32, i32
  }
  func.func @transform_3(%arg0: i32) -> (i32, i32) {
    %c0_i32 = arith.constant 0 : i32
    %c0_i32_0 = arith.constant 0 : i32
    return %arg0, %c0_i32 : i32, i32
  }
}

</mosaic_0001>

<llo_original>
// kernel: siamese_forward.1
$region0: #{siamese_forward.1}
  #allocation0 [shape = 'u32[]', space=smem, size = 0x4, offset = 0x4, fixed_abs, tag = 'smem constant byte address 0x4 - core index']
  #allocation1 [shape = 'u32[144,128]{1,0:T(1,128)}', space=vmem, size = 0x12000, scoped, tag = 'internal scratch']
  %s0 = inlined_call_operand.hbm [shape: f32[8,64], index: 0, kind: input, shape index: {}]
  %s1 = inlined_call_operand.hbm [shape: bf16[896,128], index: 1, kind: input, shape index: {}]
  %s2 = inlined_call_operand.hbm [shape: f32[24,128], index: 2, kind: input, shape index: {}]
  %s3 = inlined_call_operand.hbm [shape: f32[8,128], index: 3, kind: output, shape index: {}]
  %s4 = sld [smem:[#allocation0]]
  $region34: #{siamese_forward.1} parent=0
    _
  %s6 = ssub.s32 1, %s4
  %s7 = scalar_select 0, %s6, %s4
  $region1: #{siamese_forward.1} parent=0
    #allocation2 [shape = 'u8[4096]{0}', space=vmem, size = 0x1000, scoped, tag = 'input window, operand 0, single buffered']
    #allocation3 [shape = 's32[1]{0}', space=sflag, size = 0x4, scoped, tag = 'scoped memory for siamese_forward.1']
    #allocation4 [shape = 's32[1]{0}', space=sflag, size = 0x4, scoped, tag = 'scoped memory for siamese_forward.1']
    #allocation5 [shape = 'u8[229376]{0}', space=vmem, size = 0x38000, scoped, tag = 'input window, operand 1, single buffered']
    #allocation6 [shape = 's32[1]{0}', space=sflag, size = 0x4, scoped, tag = 'scoped memory for siamese_forward.1']
    #allocation7 [shape = 'u8[12288]{0}', space=vmem, size = 0x3000, scoped, tag = 'input window, operand 2, single buffered']
    #allocation8 [shape = 'u8[4096]{0}', space=vmem, size = 0x1000, scoped, tag = 'output window, operand 0, single buffered']
    %8 = vsyncpa [#allocation3], 0
    %9 = vsyncpa [#allocation6], 0
    %10 = vsyncpa [#allocation4], 0
    // Predicated region
    $region2: #{siamese_forward.1} parent=1 // pred_check
      _
    $region3: #{siamese_forward.1} parent=1 // pred_check_branch
      %12 = sbr.rel (0) target = $region5
    $region4: #{siamese_forward.1} parent=1 // pred_region
      %s14 = ssub.s32 128, 128
      %15 = vsyncadd [#allocation3], %s14
      %s17 = sshll.u32 [#allocation2], 4
      %s18 = int_to_ptr.vmem [resolvable:$true] %s17
      %20 = dma.hbm_to_vmem [thread:$0]  %s0, 128, %s18, [#allocation3]
    $region5: #{siamese_forward.1} parent=1 // pred_fallthru
      _
    // Predicated region
    $region6: #{siamese_forward.1} parent=1 // pred_check
      _
    $region7: #{siamese_forward.1} parent=1 // pred_check_branch
      %22 = sbr.rel (0) target = $region9
    $region8: #{siamese_forward.1} parent=1 // pred_region
      %s24 = ssub.s32 7168, 7168
      %25 = vsyncadd [#allocation6], %s24
      %s26 = sshll.u32 [#allocation5], 4
      %s27 = int_to_ptr.vmem [resolvable:$true] %s26
      %32 = dma.hbm_to_vmem [thread:$0]  %s1, 7168, %s27, [#allocation6], 64, 64, 4
    $region9: #{siamese_forward.1} parent=1 // pred_fallthru
      _
    // Predicated region
    $region10: #{siamese_forward.1} parent=1 // pred_check
      _
    $region11: #{siamese_forward.1} parent=1 // pred_check_branch
      %34 = sbr.rel (0) target = $region13
    $region12: #{siamese_forward.1} parent=1 // pred_region
      %s36 = ssub.s32 384, 384
      %37 = vsyncadd [#allocation6], %s36
      %s38 = sshll.u32 [#allocation7], 4
      %s39 = int_to_ptr.vmem [resolvable:$true] %s38
      %44 = dma.hbm_to_vmem [thread:$0]  %s2, 384, %s39, [#allocation6], 128, 128, 8
    $region13: #{siamese_forward.1} parent=1 // pred_fallthru
      _
    // Predicated region
    $region14: #{siamese_forward.1} parent=1 // pred_check
      _
    $region15: #{siamese_forward.1} parent=1 // pred_check_branch
      %46 = sbr.rel (0) target = $region17
    $region16: #{siamese_forward.1} parent=1 // pred_region
      %47 = dma.done [#allocation3], 128
    $region17: #{siamese_forward.1} parent=1 // pred_fallthru
      _
    // Predicated region
    $region18: #{siamese_forward.1} parent=1 // pred_check
      _
    $region19: #{siamese_forward.1} parent=1 // pred_check_branch
      %49 = sbr.rel (0) target = $region21
    $region20: #{siamese_forward.1} parent=1 // pred_region
      %50 = dma.done [#allocation6], 7168
    $region21: #{siamese_forward.1} parent=1 // pred_fallthru
      _
    // Predicated region
    $region22: #{siamese_forward.1} parent=1 // pred_check
      _
    $region23: #{siamese_forward.1} parent=1 // pred_check_branch
      %52 = sbr.rel (0) target = $region25
    $region24: #{siamese_forward.1} parent=1 // pred_region
      %53 = dma.done [#allocation6], 384
    $region25: #{siamese_forward.1} parent=1 // pred_fallthru
      _
    %v55 = vld [vmem:[#allocation7] sm:$0xff]
    %v56 = vld [vmem:[#allocation7 + $0x8] sm:$0xff]
    %v57 = vld [vmem:[#allocation7 + $0x10] sm:$0xff]
    %v58 = vld [vmem:[#allocation2] sm:$0xff]
    %v59 = vld [vmem:[#allocation5] sm:$0xf]
    %v60 = vld [vmem:[#allocation5 + $0x4] sm:$0xf]
    %v61 = vld [vmem:[#allocation5 + $0x8] sm:$0xf]
    %v62 = vld [vmem:[#allocation5 + $0xc] sm:$0xf]
    %v63 = vld [vmem:[#allocation5 + $0x10] sm:$0xf]
    %v64 = vld [vmem:[#allocation5 + $0x14] sm:$0xf]
    %v65 = vld [vmem:[#allocation5 + $0x18] sm:$0xf]
    %v66 = vld [vmem:[#allocation5 + $0x1c] sm:$0xf]
    %v67 = vpack.c.bf16 %v58, %v58
    %v68 = vlaneseq
    %v69 = vshrl.u32 %v68, 7
    %v70 = vsub.s32 0, %v69
    %v71 = vrot.slane %v55, %v70
    %v80 = vunpack.c.l.b16 %v59
    %v81 = vunpack.c.l.b16 %v60
    %v82 = vunpack.c.l.b16 %v61
    %v83 = vunpack.c.l.b16 %v62
    %v84 = vunpack.c.l.b16 %v63
    %v85 = vunpack.c.l.b16 %v64
    %v86 = vunpack.c.l.b16 %v65
    %v87 = vunpack.c.l.b16 %v66
    %v88 = vpack.c.b16 %v81, %v80
    %v89 = vpack.c.b16 %v83, %v82
    %v90 = vpack.c.b16 %v85, %v84
    %v91 = vpack.c.b16 %v87, %v86
    %vm96 = vcmask 523264
    %v98 = vsel %vm96, %v67, 0
    %100 = vmatprep.subr.bf16.mxu0 0
    %101 = vmatpush1.bf16.msra.mxu0 %v88
    %102 = vmatprep.subr.bf16.mxu0 0
    %103 = vmatpush1.bf16.msra.mxu0 %v89
    %104 = vmatprep.subr.bf16.mxu0 0
    %105 = vmatpush1.bf16.msra.mxu0 %v90
    %106 = vmatprep.subr.bf16.mxu0 0
    %107 = vmatpush1.bf16.msra.mxu0 %v91
    %108 = vmatprep.subr.bf16.mxu0 0
    %109 = vmatpush1.bf16.msra.mxu0 0
    %110 = vmatprep.subr.bf16.mxu0 0
    %111 = vmatpush1.bf16.msra.mxu0 0
    %112 = vmatprep.subr.bf16.mxu0 0
    %113 = vmatpush1.bf16.msra.mxu0 0
    %114 = vmatprep.subr.bf16.mxu0 0
    %115 = vmatpush1.bf16.msra.mxu0 0
    %116 = vmatprep.subr.bf16.mxu0 0
    %117 = vmatpush1.bf16.msra.mxu0 0
    %118 = vmatprep.subr.bf16.mxu0 0
    %119 = vmatpush1.bf16.msra.mxu0 0
    %120 = vmatprep.subr.bf16.mxu0 0
    %121 = vmatpush1.bf16.msra.mxu0 0
    %122 = vmatprep.subr.bf16.mxu0 0
    %123 = vmatpush1.bf16.msra.mxu0 0
    %124 = vmatprep.subr.bf16.mxu0 0
    %125 = vmatpush1.bf16.msra.mxu0 0
    %126 = vmatprep.subr.bf16.mxu0 0
    %127 = vmatpush1.bf16.msra.mxu0 0
    %128 = vmatprep.subr.bf16.mxu0 0
    %129 = vmatpush1.bf16.msra.mxu0 0
    %130 = vmatprep.subr.bf16.mxu0 0
    %131 = vmatpush1.bf16.msra.mxu0 0
    %132 = vmatprep.mubr.bf16.mxu0 0
    %133 = vmatmul.mubr.bf16.gmra.mrb[0].mxu0 %v98
    %v134 = vpop.f32.mrb[0].mxu0
    %v135 = vadd.f32 %v71, %v134
    %v136 = vpop.f32.mrb[0].mxu0
    %v137 = vpop.f32.mrb[0].mxu0
    %v138 = vpop.f32.mrb[0].mxu0
    %139 = vdwg.mxu0
    %140 = vadd.xlane.f32.xlu0 %v135
    %v141 = vpop.xlane.xlu0 %140
    %v142 = vmul.f32 %v141, 0.03125
    %v143 = vmul.f32 %v135, %v135
    %144 = vadd.xlane.f32.xlu0 %v143
    %v145 = vpop.xlane.xlu0 %144
    %v146 = vmul.f32 %v145, 0.03125
    %v147 = vmul.f32 %v142, %v142
    %v148 = vsub.f32 %v146, %v147
    %v149 = vmax.f32 %v148, 0.0
    %v150 = vsub.f32 %v135, %v142
    %v151 = vadd.f32 %v149, 1e-05
    %v152 = vrsqrt.pop %v151
    %v153 = vmul.f32 %v150, %v152
    %v154 = vlaneseq
    %v155 = vshrl.u32 %v154, 7
    %v156 = vsub.s32 1, %v155
    %v157 = vrot.slane %v55, %v156
    %v158 = vmul.f32 %v153, %v157
    %v159 = vlaneseq
    %v160 = vshrl.u32 %v159, 7
    %v161 = vsub.s32 2, %v160
    %v162 = vrot.slane %v55, %v161
    %v163 = vadd.f32 %v158, %v162
    %v164 = vld [vmem:[#allocation5 + $0x40] sm:$0xf]
    %v165 = vld [vmem:[#allocation5 + $0x44] sm:$0xf]
    %v166 = vld [vmem:[#allocation5 + $0x48] sm:$0xf]
    %v167 = vld [vmem:[#allocation5 + $0x4c] sm:$0xf]
    %v168 = vld [vmem:[#allocation5 + $0x50] sm:$0xf]
    %v169 = vld [vmem:[#allocation5 + $0x54] sm:$0xf]
    %v170 = vld [vmem:[#allocation5 + $0x58] sm:$0xf]
    %v171 = vld [vmem:[#allocation5 + $0x5c] sm:$0xf]
    %v172 = vld [vmem:[#allocation5 + $0x60] sm:$0xf]
    %v173 = vld [vmem:[#allocation5 + $0x64] sm:$0xf]
    %v174 = vld [vmem:[#allocation5 + $0x68] sm:$0xf]
    %v175 = vld [vmem:[#allocation5 + $0x6c] sm:$0xf]
    %v176 = vld [vmem:[#allocation5 + $0x70] sm:$0xf]
    %v177 = vld [vmem:[#allocation5 + $0x74] sm:$0xf]
    %v178 = vld [vmem:[#allocation5 + $0x78] sm:$0xf]
    %v179 = vld [vmem:[#allocation5 + $0x7c] sm:$0xf]
    %v180 = vpack.c.bf16 %v163, %v163
    %v181 = vlaneseq
    %v182 = vshrl.u32 %v181, 7
    %v183 = vsub.s32 3, %v182
    %v184 = vrot.slane %v55, %v183
    %v201 = vunpack.c.l.b16 %v164
    %v202 = vunpack.c.l.b16 %v165
    %v203 = vunpack.c.l.b16 %v166
    %v204 = vunpack.c.l.b16 %v167
    %v205 = vunpack.c.l.b16 %v168
    %v206 = vunpack.c.l.b16 %v169
    %v207 = vunpack.c.l.b16 %v170
    %v208 = vunpack.c.l.b16 %v171
    %v209 = vunpack.c.l.b16 %v172
    %v210 = vunpack.c.l.b16 %v173
    %v211 = vunpack.c.l.b16 %v174
    %v212 = vunpack.c.l.b16 %v175
    %v213 = vunpack.c.l.b16 %v176
    %v214 = vunpack.c.l.b16 %v177
    %v215 = vunpack.c.l.b16 %v178
    %v216 = vunpack.c.l.b16 %v179
    %v217 = vpack.c.b16 %v202, %v201
    %v218 = vpack.c.b16 %v204, %v203
    %v219 = vpack.c.b16 %v206, %v205
    %v220 = vpack.c.b16 %v208, %v207
    %v221 = vpack.c.b16 %v210, %v209
    %v222 = vpack.c.b16 %v212, %v211
    %v223 = vpack.c.b16 %v214, %v213
    %v224 = vpack.c.b16 %v216, %v215
    %233 = vmatprep.subr.bf16.mxu0 0
    %234 = vmatpush1.bf16.msra.mxu0 %v217
    %235 = vmatprep.subr.bf16.mxu0 0
    %236 = vmatpush1.bf16.msra.mxu0 %v218
    %237 = vmatprep.subr.bf16.mxu0 0
    %238 = vmatpush1.bf16.msra.mxu0 %v219
    %239 = vmatprep.subr.bf16.mxu0 0
    %240 = vmatpush1.bf16.msra.mxu0 %v220
    %241 = vmatprep.subr.bf16.mxu0 0
    %242 = vmatpush1.bf16.msra.mxu0 %v221
    %243 = vmatprep.subr.bf16.mxu0 0
    %244 = vmatpush1.bf16.msra.mxu0 %v222
    %245 = vmatprep.subr.bf16.mxu0 0
    %246 = vmatpush1.bf16.msra.mxu0 %v223
    %247 = vmatprep.subr.bf16.mxu0 0
    %248 = vmatpush1.bf16.msra.mxu0 %v224
    %249 = vmatprep.subr.bf16.mxu0 0
    %250 = vmatpush1.bf16.msra.mxu0 0
    %251 = vmatprep.subr.bf16.mxu0 0
    %252 = vmatpush1.bf16.msra.mxu0 0
    %253 = vmatprep.subr.bf16.mxu0 0
    %254 = vmatpush1.bf16.msra.mxu0 0
    %255 = vmatprep.subr.bf16.mxu0 0
    %256 = vmatpush1.bf16.msra.mxu0 0
    %257 = vmatprep.subr.bf16.mxu0 0
    %258 = vmatpush1.bf16.msra.mxu0 0
    %259 = vmatprep.subr.bf16.mxu0 0
    %260 = vmatpush1.bf16.msra.mxu0 0
    %261 = vmatprep.subr.bf16.mxu0 0
    %262 = vmatpush1.bf16.msra.mxu0 0
    %263 = vmatprep.subr.bf16.mxu0 0
    %264 = vmatpush1.bf16.msra.mxu0 0
    %265 = vmatprep.mubr.bf16.mxu0 0
    %266 = vmatmul.mubr.bf16.gmra.mrb[0].mxu0 %v180
    %v267 = vpop.f32.mrb[0].mxu0
    %v268 = vadd.f32 %v184, %v267
    %v269 = vpop.f32.mrb[0].mxu0
    %v270 = vpop.f32.mrb[0].mxu0
    %v271 = vpop.f32.mrb[0].mxu0
    %272 = vdwg.mxu0
    %v273 = vmax.f32 %v268, 0.0
    %v274 = vld [vmem:[#allocation5 + $0x80] sm:$0xf]
    %v275 = vld [vmem:[#allocation5 + $0x84] sm:$0xf]
    %v276 = vld [vmem:[#allocation5 + $0x88] sm:$0xf]
    %v277 = vld [vmem:[#allocation5 + $0x8c] sm:$0xf]
    %v278 = vld [vmem:[#allocation5 + $0x90] sm:$0xf]
    %v279 = vld [vmem:[#allocation5 + $0x94] sm:$0xf]
    %v280 = vld [vmem:[#allocation5 + $0x98] sm:$0xf]
    %v281 = vld [vmem:[#allocation5 + $0x9c] sm:$0xf]
    %v282 = vld [vmem:[#allocation5 + $0xa0] sm:$0xf]
    %v283 = vld [vmem:[#allocation5 + $0xa4] sm:$0xf]
    %v284 = vld [vmem:[#allocation5 + $0xa8] sm:$0xf]
    %v285 = vld [vmem:[#allocation5 + $0xac] sm:$0xf]
    %v286 = vld [vmem:[#allocation5 + $0xb0] sm:$0xf]
    %v287 = vld [vmem:[#allocation5 + $0xb4] sm:$0xf]
    %v288 = vld [vmem:[#allocation5 + $0xb8] sm:$0xf]
    %v289 = vld [vmem:[#allocation5 + $0xbc] sm:$0xf]
    %v290 = vpack.c.bf16 %v273, %v273
    %v291 = vlaneseq
    %v292 = vshrl.u32 %v291, 7
    %v293 = vsub.s32 4, %v292
    %v294 = vrot.slane %v55, %v293
    %v311 = vunpack.c.l.b16 %v274
    %v312 = vunpack.c.l.b16 %v275
    %v313 = vunpack.c.l.b16 %v276
    %v314 = vunpack.c.l.b16 %v277
    %v315 = vunpack.c.l.b16 %v278
    %v316 = vunpack.c.l.b16 %v279
    %v317 = vunpack.c.l.b16 %v280
    %v318 = vunpack.c.l.b16 %v281
    %v319 = vunpack.c.l.b16 %v282
    %v320 = vunpack.c.l.b16 %v283
    %v321 = vunpack.c.l.b16 %v284
    %v322 = vunpack.c.l.b16 %v285
    %v323 = vunpack.c.l.b16 %v286
    %v324 = vunpack.c.l.b16 %v287
    %v325 = vunpack.c.l.b16 %v288
    %v326 = vunpack.c.l.b16 %v289
    %v327 = vpack.c.b16 %v312, %v311
    %v328 = vpack.c.b16 %v314, %v313
    %v329 = vpack.c.b16 %v316, %v315
    %v330 = vpack.c.b16 %v318, %v317
    %v331 = vpack.c.b16 %v320, %v319
    %v332 = vpack.c.b16 %v322, %v321
    %v333 = vpack.c.b16 %v324, %v323
    %v334 = vpack.c.b16 %v326, %v325
    %343 = vmatprep.subr.bf16.mxu0 0
    %344 = vmatpush1.bf16.msra.mxu0 %v327
    %345 = vmatprep.subr.bf16.mxu0 0
    %346 = vmatpush1.bf16.msra.mxu0 %v328
    %347 = vmatprep.subr.bf16.mxu0 0
    %348 = vmatpush1.bf16.msra.mxu0 %v329
    %349 = vmatprep.subr.bf16.mxu0 0
    %350 = vmatpush1.bf16.msra.mxu0 %v330
    %351 = vmatprep.subr.bf16.mxu0 0
    %352 = vmatpush1.bf16.msra.mxu0 %v331
    %353 = vmatprep.subr.bf16.mxu0 0
    %354 = vmatpush1.bf16.msra.mxu0 %v332
    %355 = vmatprep.subr.bf16.mxu0 0
    %356 = vmatpush1.bf16.msra.mxu0 %v333
    %357 = vmatprep.subr.bf16.mxu0 0
    %358 = vmatpush1.bf16.msra.mxu0 %v334
    %359 = vmatprep.subr.bf16.mxu0 0
    %360 = vmatpush1.bf16.msra.mxu0 0
    %361 = vmatprep.subr.bf16.mxu0 0
    %362 = vmatpush1.bf16.msra.mxu0 0
    %363 = vmatprep.subr.bf16.mxu0 0
    %364 = vmatpush1.bf16.msra.mxu0 0
    %365 = vmatprep.subr.bf16.mxu0 0
    %366 = vmatpush1.bf16.msra.mxu0 0
    %367 = vmatprep.subr.bf16.mxu0 0
    %368 = vmatpush1.bf16.msra.mxu0 0
    %369 = vmatprep.subr.bf16.mxu0 0
    %370 = vmatpush1.bf16.msra.mxu0 0
    %371 = vmatprep.subr.bf16.mxu0 0
    %372 = vmatpush1.bf16.msra.mxu0 0
    %373 = vmatprep.subr.bf16.mxu0 0
    %374 = vmatpush1.bf16.msra.mxu0 0
    %375 = vmatprep.mubr.bf16.mxu0 0
    %376 = vmatmul.mubr.bf16.gmra.mrb[0].mxu0 %v290
    %v377 = vpop.f32.mrb[0].mxu0
    %v378 = vadd.f32 %v294, %v377
    %v379 = vpop.f32.mrb[0].mxu0
    %v380 = vpop.f32.mrb[0].mxu0
    %v381 = vpop.f32.mrb[0].mxu0
    %382 = vdwg.mxu0
    %v383 = vadd.f32 %v163, %v378
    %384 = vadd.xlane.f32.xlu0 %v383
    %v385 = vpop.xlane.xlu0 %384
    %v386 = vmul.f32 %v385, 0.03125
    %v387 = vmul.f32 %v383, %v383
    %388 = vadd.xlane.f32.xlu0 %v387
    %v389 = vpop.xlane.xlu0 %388
    %v390 = vmul.f32 %v389, 0.03125
    %v391 = vmul.f32 %v386, %v386
    %v392 = vsub.f32 %v390, %v391
    %v393 = vmax.f32 %v392, 0.0
    %v394 = vsub.f32 %v383, %v386
    %v395 = vadd.f32 %v393, 1e-05
    %v396 = vrsqrt.pop %v395
    %v397 = vmul.f32 %v394, %v396
    %v398 = vlaneseq
    %v399 = vshrl.u32 %v398, 7
    %v400 = vsub.s32 5, %v399
    %v401 = vrot.slane %v55, %v400
    %v402 = vmul.f32 %v397, %v401
    %v403 = vlaneseq
    %v404 = vshrl.u32 %v403, 7
    %v405 = vsub.s32 6, %v404
    %v406 = vrot.slane %v55, %v405
    %v407 = vadd.f32 %v402, %v406
    %v408 = vld [vmem:[#allocation5 + $0xc0] sm:$0xf]
    %v409 = vld [vmem:[#allocation5 + $0xc4] sm:$0xf]
    %v410 = vld [vmem:[#allocation5 + $0xc8] sm:$0xf]
    %v411 = vld [vmem:[#allocation5 + $0xcc] sm:$0xf]
    %v412 = vld [vmem:[#allocation5 + $0xd0] sm:$0xf]
    %v413 = vld [vmem:[#allocation5 + $0xd4] sm:$0xf]
    %v414 = vld [vmem:[#allocation5 + $0xd8] sm:$0xf]
    %v415 = vld [vmem:[#allocation5 + $0xdc] sm:$0xf]
    %v416 = vld [vmem:[#allocation5 + $0xe0] sm:$0xf]
    %v417 = vld [vmem:[#allocation5 + $0xe4] sm:$0xf]
    %v418 = vld [vmem:[#allocation5 + $0xe8] sm:$0xf]
    %v419 = vld [vmem:[#allocation5 + $0xec] sm:$0xf]
    %v420 = vld [vmem:[#allocation5 + $0xf0] sm:$0xf]
    %v421 = vld [vmem:[#allocation5 + $0xf4] sm:$0xf]
    %v422 = vld [vmem:[#allocation5 + $0xf8] sm:$0xf]
    %v423 = vld [vmem:[#allocation5 + $0xfc] sm:$0xf]
    %v424 = vpack.c.bf16 %v407, %v407
    %v425 = vlaneseq
    %v426 = vshrl.u32 %v425, 7
    %v427 = vsub.s32 7, %v426
    %v428 = vrot.slane %v55, %v427
    %v445 = vunpack.c.l.b16 %v408
    %v446 = vunpack.c.l.b16 %v409
    %v447 = vunpack.c.l.b16 %v410
    %v448 = vunpack.c.l.b16 %v411
    %v449 = vunpack.c.l.b16 %v412
    %v450 = vunpack.c.l.b16 %v413
    %v451 = vunpack.c.l.b16 %v414
    %v452 = vunpack.c.l.b16 %v415
    %v453 = vunpack.c.l.b16 %v416
    %v454 = vunpack.c.l.b16 %v417
    %v455 = vunpack.c.l.b16 %v418
    %v456 = vunpack.c.l.b16 %v419
    %v457 = vunpack.c.l.b16 %v420
    %v458 = vunpack.c.l.b16 %v421
    %v459 = vunpack.c.l.b16 %v422
    %v460 = vunpack.c.l.b16 %v423
    %v461 = vpack.c.b16 %v446, %v445
    %v462 = vpack.c.b16 %v448, %v447
    %v463 = vpack.c.b16 %v450, %v449
    %v464 = vpack.c.b16 %v452, %v451
    %v465 = vpack.c.b16 %v454, %v453
    %v466 = vpack.c.b16 %v456, %v455
    %v467 = vpack.c.b16 %v458, %v457
    %v468 = vpack.c.b16 %v460, %v459
    %477 = vmatprep.subr.bf16.mxu0 0
    %478 = vmatpush1.bf16.msra.mxu0 %v461
    %479 = vmatprep.subr.bf16.mxu0 0
    %480 = vmatpush1.bf16.msra.mxu0 %v462
    %481 = vmatprep.subr.bf16.mxu0 0
    %482 = vmatpush1.bf16.msra.mxu0 %v463
    %483 = vmatprep.subr.bf16.mxu0 0
    %484 = vmatpush1.bf16.msra.mxu0 %v464
    %485 = vmatprep.subr.bf16.mxu0 0
    %486 = vmatpush1.bf16.msra.mxu0 %v465
    %487 = vmatprep.subr.bf16.mxu0 0
    %488 = vmatpush1.bf16.msra.mxu0 %v466
    %489 = vmatprep.subr.bf16.mxu0 0
    %490 = vmatpush1.bf16.msra.mxu0 %v467
    %491 = vmatprep.subr.bf16.mxu0 0
    %492 = vmatpush1.bf16.msra.mxu0 %v468
    %493 = vmatprep.subr.bf16.mxu0 0
    %494 = vmatpush1.bf16.msra.mxu0 0
    %495 = vmatprep.subr.bf16.mxu0 0
    %496 = vmatpush1.bf16.msra.mxu0 0
    %497 = vmatprep.subr.bf16.mxu0 0
    %498 = vmatpush1.bf16.msra.mxu0 0
    %499 = vmatprep.subr.bf16.mxu0 0
    %500 = vmatpush1.bf16.msra.mxu0 0
    %501 = vmatprep.subr.bf16.mxu0 0
    %502 = vmatpush1.bf16.msra.mxu0 0
    %503 = vmatprep.subr.bf16.mxu0 0
    %504 = vmatpush1.bf16.msra.mxu0 0
    %505 = vmatprep.subr.bf16.mxu0 0
    %506 = vmatpush1.bf16.msra.mxu0 0
    %507 = vmatprep.subr.bf16.mxu0 0
    %508 = vmatpush1.bf16.msra.mxu0 0
    %509 = vmatprep.mubr.bf16.mxu0 0
    %510 = vmatmul.mubr.bf16.gmra.mrb[0].mxu0 %v424
    %v511 = vpop.f32.mrb[0].mxu0
    %v512 = vadd.f32 %v428, %v511
    %v513 = vpop.f32.mrb[0].mxu0
    %v514 = vpop.f32.mrb[0].mxu0
    %v515 = vpop.f32.mrb[0].mxu0
    %516 = vdwg.mxu0
    %517 = vadd.xlane.f32.xlu0 %v512
    %v518 = vpop.xlane.xlu0 %517
    %v519 = vmul.f32 %v518, 0.03125
    %v520 = vmul.f32 %v512, %v512
    %521 = vadd.xlane.f32.xlu0 %v520
    %v522 = vpop.xlane.xlu0 %521
    %v523 = vmul.f32 %v522, 0.03125
    %v524 = vmul.f32 %v519, %v519
    %v525 = vsub.f32 %v523, %v524
    %v526 = vmax.f32 %v525, 0.0
    %v527 = vsub.f32 %v512, %v519
    %v528 = vadd.f32 %v526, 1e-05
    %v529 = vrsqrt.pop %v528
    %v530 = vmul.f32 %v527, %v529
    %v531 = vlaneseq
    %v532 = vshrl.u32 %v531, 7
    %v533 = vsub.s32 0, %v532
    %v534 = vrot.slane %v56, %v533
    %v535 = vmul.f32 %v530, %v534
    %v536 = vlaneseq
    %v537 = vshrl.u32 %v536, 7
    %v538 = vsub.s32 1, %v537
    %v539 = vrot.slane %v56, %v538
    %v540 = vadd.f32 %v535, %v539
    %v541 = vld [vmem:[#allocation5 + $0x100] sm:$0xf]
    %v542 = vld [vmem:[#allocation5 + $0x104] sm:$0xf]
    %v543 = vld [vmem:[#allocation5 + $0x108] sm:$0xf]
    %v544 = vld [vmem:[#allocation5 + $0x10c] sm:$0xf]
    %v545 = vld [vmem:[#allocation5 + $0x110] sm:$0xf]
    %v546 = vld [vmem:[#allocation5 + $0x114] sm:$0xf]
    %v547 = vld [vmem:[#allocation5 + $0x118] sm:$0xf]
    %v548 = vld [vmem:[#allocation5 + $0x11c] sm:$0xf]
    %v549 = vld [vmem:[#allocation5 + $0x120] sm:$0xf]
    %v550 = vld [vmem:[#allocation5 + $0x124] sm:$0xf]
    %v551 = vld [vmem:[#allocation5 + $0x128] sm:$0xf]
    %v552 = vld [vmem:[#allocation5 + $0x12c] sm:$0xf]
    %v553 = vld [vmem:[#allocation5 + $0x130] sm:$0xf]
    %v554 = vld [vmem:[#allocation5 + $0x134] sm:$0xf]
    %v555 = vld [vmem:[#allocation5 + $0x138] sm:$0xf]
    %v556 = vld [vmem:[#allocation5 + $0x13c] sm:$0xf]
    %v557 = vpack.c.bf16 %v540, %v540
    %v558 = vlaneseq
    %v559 = vshrl.u32 %v558, 7
    %v560 = vsub.s32 2, %v559
    %v561 = vrot.slane %v56, %v560
    %v578 = vunpack.c.l.b16 %v541
    %v579 = vunpack.c.l.b16 %v542
    %v580 = vunpack.c.l.b16 %v543
    %v581 = vunpack.c.l.b16 %v544
    %v582 = vunpack.c.l.b16 %v545
    %v583 = vunpack.c.l.b16 %v546
    %v584 = vunpack.c.l.b16 %v547
    %v585 = vunpack.c.l.b16 %v548
    %v586 = vunpack.c.l.b16 %v549
    %v587 = vunpack.c.l.b16 %v550
    %v588 = vunpack.c.l.b16 %v551
    %v589 = vunpack.c.l.b16 %v552
    %v590 = vunpack.c.l.b16 %v553
    %v591 = vunpack.c.l.b16 %v554
    %v592 = vunpack.c.l.b16 %v555
    %v593 = vunpack.c.l.b16 %v556
    %v594 = vpack.c.b16 %v579, %v578
    %v595 = vpack.c.b16 %v581, %v580
    %v596 = vpack.c.b16 %v583, %v582
    %v597 = vpack.c.b16 %v585, %v584
    %v598 = vpack.c.b16 %v587, %v586
    %v599 = vpack.c.b16 %v589, %v588
    %v600 = vpack.c.b16 %v591, %v590
    %v601 = vpack.c.b16 %v593, %v592
    %610 = vmatprep.subr.bf16.mxu0 0
    %611 = vmatpush1.bf16.msra.mxu0 %v594
    %612 = vmatprep.subr.bf16.mxu0 0
    %613 = vmatpush1.bf16.msra.mxu0 %v595
    %614 = vmatprep.subr.bf16.mxu0 0
    %615 = vmatpush1.bf16.msra.mxu0 %v596
    %616 = vmatprep.subr.bf16.mxu0 0
    %617 = vmatpush1.bf16.msra.mxu0 %v597
    %618 = vmatprep.subr.bf16.mxu0 0
    %619 = vmatpush1.bf16.msra.mxu0 %v598
    %620 = vmatprep.subr.bf16.mxu0 0
    %621 = vmatpush1.bf16.msra.mxu0 %v599
    %622 = vmatprep.subr.bf16.mxu0 0
    %623 = vmatpush1.bf16.msra.mxu0 %v600
    %624 = vmatprep.subr.bf16.mxu0 0
    %625 = vmatpush1.bf16.msra.mxu0 %v601
    %626 = vmatprep.subr.bf16.mxu0 0
    %627 = vmatpush1.bf16.msra.mxu0 0
    %628 = vmatprep.subr.bf16.mxu0 0
    %629 = vmatpush1.bf16.msra.mxu0 0
    %630 = vmatprep.subr.bf16.mxu0 0
    %631 = vmatpush1.bf16.msra.mxu0 0
    %632 = vmatprep.subr.bf16.mxu0 0
    %633 = vmatpush1.bf16.msra.mxu0 0
    %634 = vmatprep.subr.bf16.mxu0 0
    %635 = vmatpush1.bf16.msra.mxu0 0
    %636 = vmatprep.subr.bf16.mxu0 0
    %637 = vmatpush1.bf16.msra.mxu0 0
    %638 = vmatprep.subr.bf16.mxu0 0
    %639 = vmatpush1.bf16.msra.mxu0 0
    %640 = vmatprep.subr.bf16.mxu0 0
    %641 = vmatpush1.bf16.msra.mxu0 0
    %642 = vmatprep.mubr.bf16.mxu0 0
    %643 = vmatmul.mubr.bf16.gmra.mrb[0].mxu0 %v557
    %v644 = vpop.f32.mrb[0].mxu0
    %v645 = vadd.f32 %v561, %v644
    %v646 = vpop.f32.mrb[0].mxu0
    %v647 = vpop.f32.mrb[0].mxu0
    %v648 = vpop.f32.mrb[0].mxu0
    %649 = vdwg.mxu0
    %v650 = vmax.f32 %v645, 0.0
    %v651 = vld [vmem:[#allocation5 + $0x140] sm:$0xf]
    %v652 = vld [vmem:[#allocation5 + $0x144] sm:$0xf]
    %v653 = vld [vmem:[#allocation5 + $0x148] sm:$0xf]
    %v654 = vld [vmem:[#allocation5 + $0x14c] sm:$0xf]
    %v655 = vld [vmem:[#allocation5 + $0x150] sm:$0xf]
    %v656 = vld [vmem:[#allocation5 + $0x154] sm:$0xf]
    %v657 = vld [vmem:[#allocation5 + $0x158] sm:$0xf]
    %v658 = vld [vmem:[#allocation5 + $0x15c] sm:$0xf]
    %v659 = vld [vmem:[#allocation5 + $0x160] sm:$0xf]
    %v660 = vld [vmem:[#allocation5 + $0x164] sm:$0xf]
    %v661 = vld [vmem:[#allocation5 + $0x168] sm:$0xf]
    %v662 = vld [vmem:[#allocation5 + $0x16c] sm:$0xf]
    %v663 = vld [vmem:[#allocation5 + $0x170] sm:$0xf]
    %v664 = vld [vmem:[#allocation5 + $0x174] sm:$0xf]
    %v665 = vld [vmem:[#allocation5 + $0x178] sm:$0xf]
    %v666 = vld [vmem:[#allocation5 + $0x17c] sm:$0xf]
    %v667 = vpack.c.bf16 %v650, %v650
    %v668 = vlaneseq
    %v669 = vshrl.u32 %v668, 7
    %v670 = vsub.s32 3, %v669
    %v671 = vrot.slane %v56, %v670
    %v688 = vunpack.c.l.b16 %v651
    %v689 = vunpack.c.l.b16 %v652
    %v690 = vunpack.c.l.b16 %v653
    %v691 = vunpack.c.l.b16 %v654
    %v692 = vunpack.c.l.b16 %v655
    %v693 = vunpack.c.l.b16 %v656
    %v694 = vunpack.c.l.b16 %v657
    %v695 = vunpack.c.l.b16 %v658
    %v696 = vunpack.c.l.b16 %v659
    %v697 = vunpack.c.l.b16 %v660
    %v698 = vunpack.c.l.b16 %v661
    %v699 = vunpack.c.l.b16 %v662
    %v700 = vunpack.c.l.b16 %v663
    %v701 = vunpack.c.l.b16 %v664
    %v702 = vunpack.c.l.b16 %v665
    %v703 = vunpack.c.l.b16 %v666
    %v704 = vpack.c.b16 %v689, %v688
    %v705 = vpack.c.b16 %v691, %v690
    %v706 = vpack.c.b16 %v693, %v692
    %v707 = vpack.c.b16 %v695, %v694
    %v708 = vpack.c.b16 %v697, %v696
    %v709 = vpack.c.b16 %v699, %v698
    %v710 = vpack.c.b16 %v701, %v700
    %v711 = vpack.c.b16 %v703, %v702
    %720 = vmatprep.subr.bf16.mxu0 0
    %721 = vmatpush1.bf16.msra.mxu0 %v704
    %722 = vmatprep.subr.bf16.mxu0 0
    %723 = vmatpush1.bf16.msra.mxu0 %v705
    %724 = vmatprep.subr.bf16.mxu0 0
    %725 = vmatpush1.bf16.msra.mxu0 %v706
    %726 = vmatprep.subr.bf16.mxu0 0
    %727 = vmatpush1.bf16.msra.mxu0 %v707
    %728 = vmatprep.subr.bf16.mxu0 0
    %729 = vmatpush1.bf16.msra.mxu0 %v708
    %730 = vmatprep.subr.bf16.mxu0 0
    %731 = vmatpush1.bf16.msra.mxu0 %v709
    %732 = vmatprep.subr.bf16.mxu0 0
    %733 = vmatpush1.bf16.msra.mxu0 %v710
    %734 = vmatprep.subr.bf16.mxu0 0
    %735 = vmatpush1.bf16.msra.mxu0 %v711
    %736 = vmatprep.subr.bf16.mxu0 0
    %737 = vmatpush1.bf16.msra.mxu0 0
    %738 = vmatprep.subr.bf16.mxu0 0
    %739 = vmatpush1.bf16.msra.mxu0 0
    %740 = vmatprep.subr.bf16.mxu0 0
    %741 = vmatpush1.bf16.msra.mxu0 0
    %742 = vmatprep.subr.bf16.mxu0 0
    %743 = vmatpush1.bf16.msra.mxu0 0
    %744 = vmatprep.subr.bf16.mxu0 0
    %745 = vmatpush1.bf16.msra.mxu0 0
    %746 = vmatprep.subr.bf16.mxu0 0
    %747 = vmatpush1.bf16.msra.mxu0 0
    %748 = vmatprep.subr.bf16.mxu0 0
    %749 = vmatpush1.bf16.msra.mxu0 0
    %750 = vmatprep.subr.bf16.mxu0 0
    %751 = vmatpush1.bf16.msra.mxu0 0
    %752 = vmatprep.mubr.bf16.mxu0 0
    %753 = vmatmul.mubr.bf16.gmra.mrb[0].mxu0 %v667
    %v754 = vpop.f32.mrb[0].mxu0
    %v755 = vadd.f32 %v671, %v754
    %v756 = vpop.f32.mrb[0].mxu0
    %v757 = vpop.f32.mrb[0].mxu0
    %v758 = vpop.f32.mrb[0].mxu0
    %759 = vdwg.mxu0
    %v760 = vadd.f32 %v540, %v755
    %761 = vadd.xlane.f32.xlu0 %v760
    %v762 = vpop.xlane.xlu0 %761
    %v763 = vmul.f32 %v762, 0.03125
    %v764 = vmul.f32 %v760, %v760
    %765 = vadd.xlane.f32.xlu0 %v764
    %v766 = vpop.xlane.xlu0 %765
    %v767 = vmul.f32 %v766, 0.03125
    %v768 = vmul.f32 %v763, %v763
    %v769 = vsub.f32 %v767, %v768
    %v770 = vmax.f32 %v769, 0.0
    %v771 = vsub.f32 %v760, %v763
    %v772 = vadd.f32 %v770, 1e-05
    %v773 = vrsqrt.pop %v772
    %v774 = vmul.f32 %v771, %v773
    %v775 = vlaneseq
    %v776 = vshrl.u32 %v775, 7
    %v777 = vsub.s32 4, %v776
    %v778 = vrot.slane %v56, %v777
    %v779 = vmul.f32 %v774, %v778
    %v780 = vlaneseq
    %v781 = vshrl.u32 %v780, 7
    %v782 = vsub.s32 5, %v781
    %v783 = vrot.slane %v56, %v782
    %v784 = vadd.f32 %v779, %v783
    %v785 = vld [vmem:[#allocation5 + $0x180] sm:$0xf]
    %v786 = vld [vmem:[#allocation5 + $0x184] sm:$0xf]
    %v787 = vld [vmem:[#allocation5 + $0x188] sm:$0xf]
    %v788 = vld [vmem:[#allocation5 + $0x18c] sm:$0xf]
    %v789 = vld [vmem:[#allocation5 + $0x190] sm:$0xf]
    %v790 = vld [vmem:[#allocation5 + $0x194] sm:$0xf]
    %v791 = vld [vmem:[#allocation5 + $0x198] sm:$0xf]
    %v792 = vld [vmem:[#allocation5 + $0x19c] sm:$0xf]
    %v793 = vld [vmem:[#allocation5 + $0x1a0] sm:$0xf]
    %v794 = vld [vmem:[#allocation5 + $0x1a4] sm:$0xf]
    %v795 = vld [vmem:[#allocation5 + $0x1a8] sm:$0xf]
    %v796 = vld [vmem:[#allocation5 + $0x1ac] sm:$0xf]
    %v797 = vld [vmem:[#allocation5 + $0x1b0] sm:$0xf]
    %v798 = vld [vmem:[#allocation5 + $0x1b4] sm:$0xf]
    %v799 = vld [vmem:[#allocation5 + $0x1b8] sm:$0xf]
    %v800 = vld [vmem:[#allocation5 + $0x1bc] sm:$0xf]
    %v801 = vpack.c.bf16 %v784, %v784
    %v802 = vlaneseq
    %v803 = vshrl.u32 %v802, 7
    %v804 = vsub.s32 6, %v803
    %v805 = vrot.slane %v56, %v804
    %v822 = vunpack.c.l.b16 %v785
    %v823 = vunpack.c.l.b16 %v786
    %v824 = vunpack.c.l.b16 %v787
    %v825 = vunpack.c.l.b16 %v788
    %v826 = vunpack.c.l.b16 %v789
    %v827 = vunpack.c.l.b16 %v790
    %v828 = vunpack.c.l.b16 %v791
    %v829 = vunpack.c.l.b16 %v792
    %v830 = vunpack.c.l.b16 %v793
    %v831 = vunpack.c.l.b16 %v794
    %v832 = vunpack.c.l.b16 %v795
    %v833 = vunpack.c.l.b16 %v796
    %v834 = vunpack.c.l.b16 %v797
    %v835 = vunpack.c.l.b16 %v798
    %v836 = vunpack.c.l.b16 %v799
    %v837 = vunpack.c.l.b16 %v800
    %v838 = vpack.c.b16 %v823, %v822
    %v839 = vpack.c.b16 %v825, %v824
    %v840 = vpack.c.b16 %v827, %v826
    %v841 = vpack.c.b16 %v829, %v828
    %v842 = vpack.c.b16 %v831, %v830
    %v843 = vpack.c.b16 %v833, %v832
    %v844 = vpack.c.b16 %v835, %v834
    %v845 = vpack.c.b16 %v837, %v836
    %854 = vmatprep.subr.bf16.mxu0 0
    %855 = vmatpush1.bf16.msra.mxu0 %v838
    %856 = vmatprep.subr.bf16.mxu0 0
    %857 = vmatpush1.bf16.msra.mxu0 %v839
    %858 = vmatprep.subr.bf16.mxu0 0
    %859 = vmatpush1.bf16.msra.mxu0 %v840
    %860 = vmatprep.subr.bf16.mxu0 0
    %861 = vmatpush1.bf16.msra.mxu0 %v841
    %862 = vmatprep.subr.bf16.mxu0 0
    %863 = vmatpush1.bf16.msra.mxu0 %v842
    %864 = vmatprep.subr.bf16.mxu0 0
    %865 = vmatpush1.bf16.msra.mxu0 %v843
    %866 = vmatprep.subr.bf16.mxu0 0
    %867 = vmatpush1.bf16.msra.mxu0 %v844
    %868 = vmatprep.subr.bf16.mxu0 0
    %869 = vmatpush1.bf16.msra.mxu0 %v845
    %870 = vmatprep.subr.bf16.mxu0 0
    %871 = vmatpush1.bf16.msra.mxu0 0
    %872 = vmatprep.subr.bf16.mxu0 0
    %873 = vmatpush1.bf16.msra.mxu0 0
    %874 = vmatprep.subr.bf16.mxu0 0
    %875 = vmatpush1.bf16.msra.mxu0 0
    %876 = vmatprep.subr.bf16.mxu0 0
    %877 = vmatpush1.bf16.msra.mxu0 0
    %878 = vmatprep.subr.bf16.mxu0 0
    %879 = vmatpush1.bf16.msra.mxu0 0
    %880 = vmatprep.subr.bf16.mxu0 0
    %881 = vmatpush1.bf16.msra.mxu0 0
    %882 = vmatprep.subr.bf16.mxu0 0
    %883 = vmatpush1.bf16.msra.mxu0 0
    %884 = vmatprep.subr.bf16.mxu0 0
    %885 = vmatpush1.bf16.msra.mxu0 0
    %886 = vmatprep.mubr.bf16.mxu0 0
    %887 = vmatmul.mubr.bf16.gmra.mrb[0].mxu0 %v801
    %v888 = vpop.f32.mrb[0].mxu0
    %v889 = vadd.f32 %v805, %v888
    %v890 = vpop.f32.mrb[0].mxu0
    %v891 = vpop.f32.mrb[0].mxu0
    %v892 = vpop.f32.mrb[0].mxu0
    %893 = vdwg.mxu0
    %894 = vadd.xlane.f32.xlu0 %v889
    %v895 = vpop.xlane.xlu0 %894
    %v896 = vmul.f32 %v895, 0.0625
    %v897 = vmul.f32 %v889, %v889
    %898 = vadd.xlane.f32.xlu0 %v897
    %v899 = vpop.xlane.xlu0 %898
    %v900 = vmul.f32 %v899, 0.0625
    %v901 = vmul.f32 %v896, %v896
    %v902 = vsub.f32 %v900, %v901
    %v903 = vmax.f32 %v902, 0.0
    %v904 = vsub.f32 %v889, %v896
    %v905 = vadd.f32 %v903, 1e-05
    %v906 = vrsqrt.pop %v905
    %v907 = vmul.f32 %v904, %v906
    %v908 = vlaneseq
    %v909 = vshrl.u32 %v908, 7
    %v910 = vsub.s32 7, %v909
    %v911 = vrot.slane %v56, %v910
    %v912 = vmul.f32 %v907, %v911
    %v913 = vlaneseq
    %v914 = vshrl.u32 %v913, 7
    %v915 = vsub.s32 0, %v914
    %v916 = vrot.slane %v57, %v915
    %v917 = vadd.f32 %v912, %v916
    %v918 = vmul.f32 %v917, %v917
    %919 = vadd.xlane.f32.xlu0 %v918
    %v920 = vpop.xlane.xlu0 %919
    %v921 = vmax.f32 %v920, 1e-24
    %v922 = vrsqrt.pop %v921
    %v923 = vmul.f32 %v917, %v922
    %924 = vst [vmem:[#allocation8] sm:$0xff] %v923
    // Predicated region
    $region26: #{siamese_forward.1} parent=1 // pred_check
      _
    $region27: #{siamese_forward.1} parent=1 // pred_check_branch
      %926 = sbr.rel (0) target = $region29
    $region28: #{siamese_forward.1} parent=1 // pred_region
      %s928 = ssub.s32 128, 128
      %929 = vsyncadd [#allocation4], %s928
      %s931 = sshll.u32 [#allocation8], 4
      %s932 = int_to_ptr.vmem [resolvable:$true] %s931
      %934 = dma.vmem_to_hbm [thread:$0]  %s932, 128, %s3, [#allocation4]
    $region29: #{siamese_forward.1} parent=1 // pred_fallthru
      _
    // Predicated region
    $region30: #{siamese_forward.1} parent=1 // pred_check
      _
    $region31: #{siamese_forward.1} parent=1 // pred_check_branch
      %936 = sbr.rel (0) target = $region33
    $region32: #{siamese_forward.1} parent=1 // pred_region
      %937 = dma.done [#allocation4], 128
    $region33: #{siamese_forward.1} parent=1 // pred_fallthru
      _
    %938 = vsyncpa [#allocation3], 1
    %939 = vsyncpa [#allocation6], 1
    %940 = vsyncpa [#allocation4], 1

</llo_original>
